<compile_context>
chip_gen: v7x
topology: tpu7x:2x2x1
jax: 0.10.0
libtpu: 0.0.40
codegen_flags: <defaults>
</compile_context>

<pallas_src>
import types
import numpy as np
import jax
import jax.numpy as jnp
from jax.experimental import pallas as pl
from jax.experimental.pallas import tpu as pltpu

N_PAD = 128  # lane-dense output width (only column 0 is meaningful downstream)

_VMEM = pl.BlockSpec(memory_space=pltpu.MemorySpace.VMEM)
_SMEM = pl.BlockSpec(memory_space=pltpu.MemorySpace.SMEM)


def _round_up(n, m):
    return ((n + m - 1) // m) * m


# ----------------------------------------------------------------------------- kernels
def _fm_kernel(b_ref, x_ref, rhs_ref, o_ref):
    """Fused FM head: one MXU push for lin, (xV^T)^2 and x^2(V^2)^T.

    rhs layout (packed once at init): col 0 = w, cols 1:6 = V^T, cols 6:11 = (V^T)^2.
    """
    x = x_ref[...]                                    # (Bp, Dp) f32
    bp = x_ref.shape[0]
    lhs = jnp.concatenate([x, x * x], axis=0)         # (2*Bp, Dp), sublane-aligned concat
    out = jnp.dot(lhs, rhs_ref[...], preferred_element_type=jnp.float32)  # (2*Bp, 128)

    row = jax.lax.broadcasted_iota(jnp.int32, out.shape, 0)
    lane = jax.lax.broadcasted_iota(jnp.int32, out.shape, 1)
    i1 = jnp.where((row < bp) & (lane >= 1) & (lane < 6), out, 0.0)    # x @ V^T
    i2 = jnp.where((row >= bp) & (lane >= 6) & (lane < 11), out, 0.0)  # x^2 @ (V^2)^T
    interact = 0.5 * (jnp.sum(i1 * i1) - jnp.sum(i2))

    # column 0 of out[:bp] is x @ w; other columns are sliced away by the wrapper.
    o_ref[...] = out[:bp, :] + (interact + b_ref[0, 0])


def _lfm_kernel(x_ref, w_ref, bias_ref, o_ref):
    lin = jnp.dot(x_ref[...], w_ref[...], preferred_element_type=jnp.float32)
    o_ref[...] = lin + bias_ref[...]                  # (Bp,1) bias broadcasts over lanes


def _mlp_kernel(b_ref, x_ref, w_ref, o_ref):
    lin = jnp.dot(x_ref[...], w_ref[...], preferred_element_type=jnp.float32) + b_ref[0, 0]
    o_ref[...] = jnp.maximum(lin, 0.0)


# ----------------------------------------------------------------------------- jitted forwards
def _pad_x(feature, bp, dp):
    B, D = feature.shape
    return jnp.zeros((bp, dp), jnp.float32).at[:B, :D].set(feature.astype(jnp.float32))


@jax.jit
def _fm_forward(rhs, fc_b, feature):
    B, D = feature.shape
    bp = _round_up(max(B, 1), 8)
    dp = rhs.shape[0]
    x = _pad_x(feature, bp, dp)
    b = jnp.reshape(fc_b, (1, 1)).astype(jnp.float32)
    cost = pl.CostEstimate(flops=2 * (2 * bp) * dp * N_PAD, transcendentals=0,
                           bytes_accessed=4 * (bp * dp + dp * N_PAD + bp * N_PAD))
    out = pl.pallas_call(
        _fm_kernel,
        out_shape=jax.ShapeDtypeStruct((bp, N_PAD), jnp.float32),
        in_specs=[_SMEM, _VMEM, _VMEM],
        out_specs=_VMEM,
        cost_estimate=cost,
    )(b, x, rhs)
    return out[:B, :1]


@jax.jit
def _lfm_forward(w, fc_b, b_users, b_items, feature, uid, iid):
    B, D = feature.shape
    bp = _round_up(max(B, 1), 8)
    dp = w.shape[0]
    x = _pad_x(feature, bp, dp)
    bias = fc_b + b_users[uid] + b_items[iid]                         # (B,1) gather = glue
    bias_p = jnp.zeros((bp, 1), jnp.float32).at[:B, :].set(bias.astype(jnp.float32))
    cost = pl.CostEstimate(flops=2 * bp * dp * N_PAD, transcendentals=0,
                           bytes_accessed=4 * (bp * dp + dp * N_PAD + bp + bp * N_PAD))
    out = pl.pallas_call(
        _lfm_kernel,
        out_shape=jax.ShapeDtypeStruct((bp, N_PAD), jnp.float32),
        in_specs=[_VMEM, _VMEM, _VMEM],
        out_specs=_VMEM,
        cost_estimate=cost,
    )(x, w, bias_p)
    return out[:B, :1]


@jax.jit
def _mlp_forward(w, fc_b, feature):
    B, D = feature.shape
    bp = _round_up(max(B, 1), 8)
    dp = w.shape[0]
    x = _pad_x(feature, bp, dp)
    b = jnp.reshape(fc_b, (1, 1)).astype(jnp.float32)
    cost = pl.CostEstimate(flops=2 * bp * dp * N_PAD, transcendentals=0,
                           bytes_accessed=4 * (bp * dp + dp * N_PAD + bp * N_PAD))
    out = pl.pallas_call(
        _mlp_kernel,
        out_shape=jax.ShapeDtypeStruct((bp, N_PAD), jnp.float32),
        in_specs=[_SMEM, _VMEM, _VMEM],
        out_specs=_VMEM,
        cost_estimate=cost,
    )(b, x, w)
    return out[0, :1]


# ----------------------------------------------------------------------------- module
class PredictionNet:
    """JAX/Pallas port of hdlr.models.prediction.PredictionNet (fm / lfm / mlp heads)."""

    def __init__(self, opt, key):
        self.output = opt.output
        dim = opt.feature_dim
        self.dim = dim
        dp = _round_up(max(dim, 1), 128)
        k = jax.random.split(key, 5)

        if opt.output == "fm":
            bound = float(np.sqrt(6.0 / (dim + 1)))                   # xavier_uniform (1, dim)
            fc_w = jax.random.uniform(k[0], (1, dim), jnp.float32, -bound, bound)
            fc_b = jax.random.uniform(k[1], (), jnp.float32, 0.0, 1.0)
            fm_V = jax.random.uniform(k[2], (5, dim), jnp.float32, 0.0, 1.0)
            self.params = {"fc_w": fc_w, "fc_b": fc_b, "fm_V": fm_V}
            # packed RHS built once: [w | V^T | (V^T)^2], zero-padded to (dp, 128)
            rhs = jnp.zeros((dp, N_PAD), jnp.float32)
            rhs = rhs.at[:dim, 0:1].set(fc_w.T)
            rhs = rhs.at[:dim, 1:6].set(fm_V.T)
            rhs = rhs.at[:dim, 6:11].set((fm_V * fm_V).T)
            self._rhs = rhs
        elif opt.output == "lfm":
            fc_w = jax.random.uniform(k[0], (1, dim), jnp.float32, -0.1, 0.1)
            fc_b = jax.random.uniform(k[1], (), jnp.float32, 0.5, 1.5)
            b_users = jax.random.uniform(k[2], (opt.user_num, 1), jnp.float32, 0.5, 1.5)
            b_items = jax.random.normal(k[3], (opt.item_num, 1), jnp.float32)
            self.params = {"fc_w": fc_w, "fc_b": fc_b,
                           "b_users": b_users, "b_items": b_items}
            self._w = jnp.zeros((dp, N_PAD), jnp.float32).at[:dim, 0:1].set(fc_w.T)
        elif opt.output == "mlp":
            bound = float(np.sqrt(6.0 / (dim + 1)))
            fc_w = jax.random.uniform(k[0], (1, dim), jnp.float32, -bound, bound)
            fc_b = jax.random.uniform(k[1], (), jnp.float32, 0.0, 1.0)
            self.params = {"fc_w": fc_w, "fc_b": fc_b}
            self._w = jnp.zeros((dp, N_PAD), jnp.float32).at[:dim, 0:1].set(fc_w.T)
        else:
            raise ValueError(opt.output)

    def __call__(self, feature, uid, iid):
        p = self.params
        if self.output == "lfm":
            return _lfm_forward(self._w, p["fc_b"], p["b_users"], p["b_items"],
                                feature, uid, iid)
        elif self.output == "fm":
            return _fm_forward(self._rhs, p["fc_b"], feature)
        else:
            return _mlp_forward(self._w, p["fc_b"], feature)


# ----------------------------------------------------------------------------- reference (plain JAX)
def _ref(net, feature, uid, iid):
    p = net.params
    lin = feature @ p["fc_w"].T + p["fc_b"]                           # (B, 1)
    if net.output == "fm":
        i1 = (feature @ p["fm_V"].T) ** 2
        i2 = (feature ** 2) @ (p["fm_V"] ** 2).T
        return 0.5 * jnp.sum(i1 - i2) + lin
    if net.output == "lfm":
        return lin + p["b_users"][uid] + p["b_items"][iid]
    return jnp.maximum(lin[0], 0.0)                                   # mlp


# ----------------------------------------------------------------------------- main
if __name__ == "__main__":
    key = jax.random.PRNGKey(0)
    k_feat, k_net = jax.random.split(key)

    B, FEATURE_DIM, USER_NUM, ITEM_NUM = 2, 32, 10, 7
    feature = jax.random.normal(k_feat, (B, FEATURE_DIM), jnp.float32)
    uid = jnp.array([1, 3], jnp.int32)
    iid = jnp.array([0, 5], jnp.int32)

    ok = True
    for mode in ("fm", "lfm", "mlp"):
        opt = types.SimpleNamespace(output=mode, feature_dim=FEATURE_DIM,
                                    user_num=USER_NUM, item_num=ITEM_NUM)
        net = PredictionNet(opt, k_net)
        out = jax.block_until_ready(net(feature, uid, iid))
        ref = _ref(net, feature, uid, iid)
        ok &= out.shape == ref.shape
        ok &= bool(np.allclose(np.asarray(out), np.asarray(ref), rtol=1e-5, atol=1e-5))

    if ok:
        print("KERNEL_OK")
    else:
        print("KERNEL_MISMATCH")
</pallas_src>

<mosaic_0001>
module attributes {stable_mosaic.version = 11 : i64} {
  func.func @_fm_kernel(%arg0: memref<1x1xf32, #tpu.memory_space<smem>>, %arg1: memref<8x128xf32, #tpu.memory_space<vmem>>, %arg2: memref<128x128xf32, #tpu.memory_space<vmem>>, %arg3: memref<8x128xf32, #tpu.memory_space<vmem>>) attributes {dimension_semantics = [], scalar_prefetch = 0 : i64, scratch_operands = 0 : i64, tpu.core_type = #tpu.core_type<tc>} {
    %c0 = arith.constant 0 : index
    %c0_0 = arith.constant 0 : index
    %0 = vector.load %arg1[%c0, %c0_0] : memref<8x128xf32, #tpu.memory_space<vmem>>, vector<8x128xf32>
    %1 = arith.mulf %0, %0 : vector<8x128xf32>
    %2 = tpu.concatenate %0, %1 in 0 : vector<8x128xf32>, vector<8x128xf32> -> vector<16x128xf32>
    %c0_1 = arith.constant 0 : index
    %c0_2 = arith.constant 0 : index
    %3 = vector.load %arg2[%c0_1, %c0_2] : memref<128x128xf32, #tpu.memory_space<vmem>>, vector<128x128xf32>
    %cst = arith.constant dense<0.000000e+00> : vector<16x128xf32>
    %4 = tpu.matmul %2, %3, %cst {dimension_numbers = #tpu.dot_dimension_numbers<[1], [0], [0], [1], [0, 0, 1, 1], [], []>} : vector<16x128xf32>, vector<128x128xf32>, vector<16x128xf32> -> vector<16x128xf32>
    %5 = tpu.iota {dimensions = array<i32: 0>} : vector<16x128xi32>
    %6 = tpu.iota {dimensions = array<i32: 1>} : vector<16x128xi32>
    %c8_i32 = arith.constant 8 : i32
    %7 = vector.broadcast %c8_i32 : i32 to vector<16x128xi32>
    %8 = arith.cmpi slt, %5, %7 : vector<16x128xi32>
    %c1_i32 = arith.constant 1 : i32
    %9 = vector.broadcast %c1_i32 : i32 to vector<16x128xi32>
    %10 = arith.cmpi sge, %6, %9 : vector<16x128xi32>
    %11 = arith.andi %8, %10 : vector<16x128xi1>
    %c6_i32 = arith.constant 6 : i32
    %12 = vector.broadcast %c6_i32 : i32 to vector<16x128xi32>
    %13 = arith.cmpi slt, %6, %12 : vector<16x128xi32>
    %14 = arith.andi %11, %13 : vector<16x128xi1>
    %cst_3 = arith.constant 0.000000e+00 : f32
    %15 = vector.broadcast %cst_3 : f32 to vector<16x128xf32>
    %16 = arith.select %14, %4, %15 : vector<16x128xi1>, vector<16x128xf32>
    %c8_i32_4 = arith.constant 8 : i32
    %17 = vector.broadcast %c8_i32_4 : i32 to vector<16x128xi32>
    %18 = arith.cmpi sge, %5, %17 : vector<16x128xi32>
    %c6_i32_5 = arith.constant 6 : i32
    %19 = vector.broadcast %c6_i32_5 : i32 to vector<16x128xi32>
    %20 = arith.cmpi sge, %6, %19 : vector<16x128xi32>
    %21 = arith.andi %18, %20 : vector<16x128xi1>
    %c11_i32 = arith.constant 11 : i32
    %22 = vector.broadcast %c11_i32 : i32 to vector<16x128xi32>
    %23 = arith.cmpi slt, %6, %22 : vector<16x128xi32>
    %24 = arith.andi %21, %23 : vector<16x128xi1>
    %cst_6 = arith.constant 0.000000e+00 : f32
    %25 = vector.broadcast %cst_6 : f32 to vector<16x128xf32>
    %26 = arith.select %24, %4, %25 : vector<16x128xi1>, vector<16x128xf32>
    %27 = arith.mulf %16, %16 : vector<16x128xf32>
    %28 = vector.shape_cast %27 : vector<16x128xf32> to vector<1x16x128xf32>
    %cst_7 = arith.constant dense<0.000000e+00> : vector<1xf32>
    %29 = vector.multi_reduction <add>, %28, %cst_7 [1, 2] : vector<1x16x128xf32> to vector<1xf32>
    %30 = vector.shape_cast %29 : vector<1xf32> to vector<1x1x1xf32>
    %31 = vector.extract %30[0, 0, 0] : f32 from vector<1x1x1xf32>
    %32 = vector.shape_cast %26 : vector<16x128xf32> to vector<1x16x128xf32>
    %cst_8 = arith.constant dense<0.000000e+00> : vector<1xf32>
    %33 = vector.multi_reduction <add>, %32, %cst_8 [1, 2] : vector<1x16x128xf32> to vector<1xf32>
    %34 = vector.shape_cast %33 : vector<1xf32> to vector<1x1x1xf32>
    %35 = vector.extract %34[0, 0, 0] : f32 from vector<1x1x1xf32>
    %36 = arith.subf %31, %35 : f32
    %cst_9 = arith.constant 5.000000e-01 : f32
    %37 = arith.mulf %cst_9, %36 : f32
    %38 = vector.extract_strided_slice %4 {offsets = [0, 0], sizes = [8, 128], strides = [1, 1]} : vector<16x128xf32> to vector<8x128xf32>
    %c0_10 = arith.constant 0 : index
    %c0_11 = arith.constant 0 : index
    %39 = memref.load %arg0[%c0_10, %c0_11] : memref<1x1xf32, #tpu.memory_space<smem>>
    %40 = arith.addf %37, %39 : f32
    %41 = vector.broadcast %40 : f32 to vector<8x128xf32>
    %42 = arith.addf %38, %41 : vector<8x128xf32>
    %c0_12 = arith.constant 0 : index
    %c0_13 = arith.constant 0 : index
    %43 = vector.load %arg3[%c0_12, %c0_13] : memref<8x128xf32, #tpu.memory_space<vmem>>, vector<8x128xf32>
    tpu.vector_store %arg3[%c0_12, %c0_13], %42 {strides = array<i32>} : memref<8x128xf32, #tpu.memory_space<vmem>>, vector<8x128xf32>,
    return
  }
}

</mosaic_0001>

<llo_original>
// kernel: _fm_forward.1
$region0: #{_fm_forward.1}
  #allocation0 [shape = 'u32[]', space=smem, size = 0x4, offset = 0x4, fixed_abs, tag = 'smem constant byte address 0x4 - core index']
  #allocation1 [shape = 'u32[144,128]{1,0:T(1,128)}', space=vmem, size = 0x12000, scoped, tag = 'internal scratch']
  #allocation2 [shape = 'f32[1,1]{1,0:T(1,128)S(6)}', space=smem, size = 0x200, scoped, tag = 'scoped memory for _fm_forward.1']
  %s0 = inlined_call_operand.<no memory space> [shape: f32[1,1], index: 0, kind: input, shape index: {}]
  %s1 = inlined_call_operand.vmem [shape: f32[8,128], index: 1, kind: input, shape index: {}]
  %s2 = inlined_call_operand.hbm [shape: f32[128,128], index: 2, kind: input, shape index: {}]
  %s3 = inlined_call_operand.vmem [shape: f32[8,128], index: 3, kind: output, shape index: {}]
  %s4 = sld [smem:[#allocation0]]
  $region26: #{_fm_forward.1} parent=0
    _
  %s6 = ssub.s32 1, %s4
  %s7 = scalar_select 0, %s6, %s4
  %8 = sst [smem:[#allocation2]] %s0
  $region1: #{_fm_forward.1} parent=0
    #allocation3 [shape = 'u8[65536]{0}', space=vmem, size = 0x10000, scoped, tag = 'input window, operand 2, single buffered']
    #allocation4 [shape = 's32[1]{0}', space=sflag, size = 0x4, scoped, tag = 'scoped memory for _fm_forward.1']
    %9 = vsyncpa [#allocation4], 0
    // Predicated region
    $region2: #{_fm_forward.1} parent=1 // pred_check
      _
    $region3: #{_fm_forward.1} parent=1 // pred_check_branch
      %11 = sbr.rel (0) target = $region5
    $region4: #{_fm_forward.1} parent=1 // pred_region
      _
    $region5: #{_fm_forward.1} parent=1 // pred_fallthru
      _
    // Predicated region
    $region6: #{_fm_forward.1} parent=1 // pred_check
      _
    $region7: #{_fm_forward.1} parent=1 // pred_check_branch
      %13 = sbr.rel (0) target = $region9
    $region8: #{_fm_forward.1} parent=1 // pred_region
      _
    $region9: #{_fm_forward.1} parent=1 // pred_fallthru
      _
    // Predicated region
    $region10: #{_fm_forward.1} parent=1 // pred_check
      _
    $region11: #{_fm_forward.1} parent=1 // pred_check_branch
      %15 = sbr.rel (0) target = $region13
    $region12: #{_fm_forward.1} parent=1 // pred_region
      %s17 = ssub.s32 2048, 2048
      %18 = vsyncadd [#allocation4], %s17
      %s19 = sshll.u32 [#allocation3], 4
      %s20 = int_to_ptr.vmem [resolvable:$true] %s19
      %25 = dma.hbm_to_vmem [thread:$0]  %s2, 2048, %s20, [#allocation4], 128, 128, 8
    $region13: #{_fm_forward.1} parent=1 // pred_fallthru
      _
    // Predicated region
    $region14: #{_fm_forward.1} parent=1 // pred_check
      _
    $region15: #{_fm_forward.1} parent=1 // pred_check_branch
      %27 = sbr.rel (0) target = $region17
    $region16: #{_fm_forward.1} parent=1 // pred_region
      %28 = dma.done [#allocation4], 2048
    $region17: #{_fm_forward.1} parent=1 // pred_fallthru
      _
    %v29 = vld [vmem:[%s1] sm:$0xff]
    %v30 = vmul.f32 %v29, %v29
    %v31 = vld [vmem:[#allocation3] sm:$0xff]
    %v32 = vld [vmem:[#allocation3 + $0x8] sm:$0xff]
    %v33 = vld [vmem:[#allocation3 + $0x10] sm:$0xff]
    %v34 = vld [vmem:[#allocation3 + $0x18] sm:$0xff]
    %v35 = vld [vmem:[#allocation3 + $0x20] sm:$0xff]
    %v36 = vld [vmem:[#allocation3 + $0x28] sm:$0xff]
    %v37 = vld [vmem:[#allocation3 + $0x30] sm:$0xff]
    %v38 = vld [vmem:[#allocation3 + $0x38] sm:$0xff]
    %v39 = vld [vmem:[#allocation3 + $0x40] sm:$0xff]
    %v40 = vld [vmem:[#allocation3 + $0x48] sm:$0xff]
    %v41 = vld [vmem:[#allocation3 + $0x50] sm:$0xff]
    %v42 = vld [vmem:[#allocation3 + $0x58] sm:$0xff]
    %v43 = vld [vmem:[#allocation3 + $0x60] sm:$0xff]
    %v44 = vld [vmem:[#allocation3 + $0x68] sm:$0xff]
    %v45 = vld [vmem:[#allocation3 + $0x70] sm:$0xff]
    %v46 = vld [vmem:[#allocation3 + $0x78] sm:$0xff]
    %47 = vmatprep.subr.mxu0 0.0
    %48 = vmatpush1.msra.mxu0 %v31
    %49 = vmatprep.subr.mxu0 0.0
    %50 = vmatpush1.msra.mxu0 %v32
    %51 = vmatprep.subr.mxu0 0.0
    %52 = vmatpush1.msra.mxu0 %v33
    %53 = vmatprep.subr.mxu0 0.0
    %54 = vmatpush1.msra.mxu0 %v34
    %55 = vmatprep.subr.mxu0 0.0
    %56 = vmatpush1.msra.mxu0 %v35
    %57 = vmatprep.subr.mxu0 0.0
    %58 = vmatpush1.msra.mxu0 %v36
    %59 = vmatprep.subr.mxu0 0.0
    %60 = vmatpush1.msra.mxu0 %v37
    %61 = vmatprep.subr.mxu0 0.0
    %62 = vmatpush1.msra.mxu0 %v38
    %63 = vmatprep.subr.mxu0 0.0
    %64 = vmatpush1.msra.mxu0 %v39
    %65 = vmatprep.subr.mxu0 0.0
    %66 = vmatpush1.msra.mxu0 %v40
    %67 = vmatprep.subr.mxu0 0.0
    %68 = vmatpush1.msra.mxu0 %v41
    %69 = vmatprep.subr.mxu0 0.0
    %70 = vmatpush1.msra.mxu0 %v42
    %71 = vmatprep.subr.mxu0 0.0
    %72 = vmatpush1.msra.mxu0 %v43
    %73 = vmatprep.subr.mxu0 0.0
    %74 = vmatpush1.msra.mxu0 %v44
    %75 = vmatprep.subr.mxu0 0.0
    %76 = vmatpush1.msra.mxu0 %v45
    %77 = vmatprep.subr.mxu0 0.0
    %78 = vmatpush1.msra.mxu0 %v46
    %79 = vmatprep.subr.mxu0 0.0
    %80 = vmatpush1.msra.mxu0 0.0
    %81 = vmatprep.subr.mxu0 0.0
    %82 = vmatpush1.msra.mxu0 0.0
    %83 = vmatprep.subr.mxu0 0.0
    %84 = vmatpush1.msra.mxu0 0.0
    %85 = vmatprep.subr.mxu0 0.0
    %86 = vmatpush1.msra.mxu0 0.0
    %87 = vmatprep.subr.mxu0 0.0
    %88 = vmatpush1.msra.mxu0 0.0
    %89 = vmatprep.subr.mxu0 0.0
    %90 = vmatpush1.msra.mxu0 0.0
    %91 = vmatprep.subr.mxu0 0.0
    %92 = vmatpush1.msra.mxu0 0.0
    %93 = vmatprep.subr.mxu0 0.0
    %94 = vmatpush1.msra.mxu0 0.0
    %95 = vmatprep.subr.mxu0 0.0
    %96 = vmatpush1.msra.mxu0 0.0
    %97 = vmatprep.subr.mxu0 0.0
    %98 = vmatpush1.msra.mxu0 0.0
    %99 = vmatprep.subr.mxu0 0.0
    %100 = vmatpush1.msra.mxu0 0.0
    %101 = vmatprep.subr.mxu0 0.0
    %102 = vmatpush1.msra.mxu0 0.0
    %103 = vmatprep.subr.mxu0 0.0
    %104 = vmatpush1.msra.mxu0 0.0
    %105 = vmatprep.subr.mxu0 0.0
    %106 = vmatpush1.msra.mxu0 0.0
    %107 = vmatprep.subr.mxu0 0.0
    %108 = vmatpush1.msra.mxu0 0.0
    %109 = vmatprep.subr.mxu0 0.0
    %110 = vmatpush1.msra.mxu0 0.0
    %111 = vmatprep.mubr.f32.mxu0 0.0
    %112 = vmatmul.mubr.f32.gmra.mrb[0].mxu0 %v29
    %v113 = vpop.f32.mrb[0].mxu0
    %v114 = vadd.f32 0.0, %v113
    %v115 = vpop.f32.mrb[0].mxu0
    %116 = vmatprep.mubr.f32.mxu0 0.0
    %117 = vmatmul.mubr.f32.gmra.mrb[0].mxu0 %v30
    %v118 = vpop.f32.mrb[0].mxu0
    %v119 = vadd.f32 0.0, %v118
    %v120 = vpop.f32.mrb[0].mxu0
    %121 = vdwg.mxu0
    %v122 = vlaneseq
    %v123 = vshrl.u32 %v122, 7
    %v124 = vadd.s32 %v123, 8
    %v125 = vlaneseq
    %v126 = vand.u32 %v125, 127
    %vm127 = vcmp.lt.s32.totalorder %v123, 8
    %vm128 = vcmp.lt.s32.totalorder %v124, 8
    %vm129 = vcmp.ge.s32.totalorder %v126, 1
    %vm130 = vmand %vm127, %vm129
    %vm131 = vmand %vm128, %vm129
    %vm132 = vcmp.lt.s32.totalorder %v126, 6
    %vm133 = vmand %vm130, %vm132
    %vm134 = vmand %vm131, %vm132
    %v135 = vsel %vm133, %v114, 0.0
    %v136 = vsel %vm134, %v119, 0.0
    %vm137 = vcmp.ge.s32.totalorder %v123, 8
    %vm138 = vcmp.ge.s32.totalorder %v124, 8
    %vm139 = vcmp.ge.s32.totalorder %v126, 6
    %vm140 = vmand %vm137, %vm139
    %vm141 = vmand %vm138, %vm139
    %vm142 = vcmp.lt.s32.totalorder %v126, 11
    %vm143 = vmand %vm140, %vm142
    %vm144 = vmand %vm141, %vm142
    %v145 = vsel %vm143, %v114, 0.0
    %v146 = vsel %vm144, %v119, 0.0
    %v147 = vmul.f32 %v135, %v135
    %v148 = vmul.f32 %v136, %v136
    %v149 = vadd.f32 %v147, %v148
    %150 = vadd.xlane.f32.xlu0 %v149
    %v151 = vpop.xlane.xlu0 %150
    %v152 = vrot.slane %v151, 4
    %v153 = vadd.f32 %v151, %v152
    %v154 = vrot.slane %v153, 2
    %v155 = vadd.f32 %v153, %v154
    %v156 = vrot.slane %v155, 1
    %v157 = vadd.f32 %v155, %v156
    %s158 = vtos %v157
    %v159 = vadd.f32 %v145, %v146
    %160 = vadd.xlane.f32.xlu0 %v159
    %v161 = vpop.xlane.xlu0 %160
    %v162 = vrot.slane %v161, 4
    %v163 = vadd.f32 %v161, %v162
    %v164 = vrot.slane %v163, 2
    %v165 = vadd.f32 %v163, %v164
    %v166 = vrot.slane %v165, 1
    %v167 = vadd.f32 %v165, %v166
    %s168 = vtos %v167
    %s169 = ssub.f32 %s158, %s168
    %s170 = smul.f32 %s169, 0.5
    %s171 = sld [smem:[#allocation2]]
    %s172 = sadd.f32 %s170, %s171
    %v173 = vstv %s172
    %v174 = vadd.f32 %v114, %v173
    %175 = vst [vmem:[%s3] sm:$0xff] %v174
    // Predicated region
    $region18: #{_fm_forward.1} parent=1 // pred_check
      _
    $region19: #{_fm_forward.1} parent=1 // pred_check_branch
      %177 = sbr.rel (0) target = $region21
    $region20: #{_fm_forward.1} parent=1 // pred_region
      _
    $region21: #{_fm_forward.1} parent=1 // pred_fallthru
      _
    // Predicated region
    $region22: #{_fm_forward.1} parent=1 // pred_check
      _
    $region23: #{_fm_forward.1} parent=1 // pred_check_branch
      %179 = sbr.rel (0) target = $region25
    $region24: #{_fm_forward.1} parent=1 // pred_region
      _
    $region25: #{_fm_forward.1} parent=1 // pred_fallthru
      _
    %180 = vsyncpa [#allocation4], 1

</llo_original>
